<compile_context>
chip_gen: v6e
topology: v6e:2x2x1
jax: 0.10.0
libtpu: 0.0.40
codegen_flags: <defaults>
</compile_context>

<pallas_src>
import jax
import jax.numpy as jnp
from jax import lax
from jax.experimental import pallas as pl
from jax.experimental.pallas import tpu as pltpu


def _mlp_kernel(x_ref, w1_ref, b1_ref, w2_ref, b2_ref, w3_ref, b3_ref, o_ref):
    """One batch tile of the AgerRegression MLP (batch on the lane dimension).

    x_ref  : [TM, D]    f32  -- contiguous batch-row tile (no transpose buffer)
    w*_ref : [out, in]  f32  -- PyTorch-native nn.Linear layout, VMEM-resident
    b*_ref : [out, 1]   f32
    o_ref  : [8,  TM]   f32  -- sigmoid(net(x)) with batch on lanes; row 7 is padding
    """
    x = x_ref[...]
    # Layer 1: contract D of W1[H1,D] with D of x[TM,D] -> [H1, TM].
    h1 = lax.dot_general(w1_ref[...], x, (((1,), (1,)), ((), ())),
                         preferred_element_type=jnp.float32) + b1_ref[...]
    h1 = jnp.maximum(h1, 0.1 * h1)                      # LeakyReLU(0.1)
    # Layer 2: [H2,H1] @ [H1,TM] -> [H2, TM].
    h2 = jnp.dot(w2_ref[...], h1, preferred_element_type=jnp.float32) + b2_ref[...]
    h2 = jnp.maximum(h2, 0.1 * h2)
    # Layer 3 + Sigmoid (EUP, f32): [8,H2] @ [H2,TM] -> [8, TM].
    h3 = jnp.dot(w3_ref[...], h2, preferred_element_type=jnp.float32) + b3_ref[...]
    o_ref[...] = jax.nn.sigmoid(h3)


def ager_regression_net(x, params, *, tile_m=None, tile_vmem_budget_bytes=16 << 20):
    """Pallas implementation of AgerRegression.net(ents_emb).

    x: [N, embed_dim] float
    params (PyTorch-native nn.Linear layout):
      w1 [D/2, D], b1 [D/2], w2 [D/4, D/2], b2 [D/4], w3 [7, D/4], b3 [7]
    returns: [N, 7] float32 sigmoid activations.
    """
    x = jnp.asarray(x, jnp.float32)
    N, D = x.shape

    w1 = jnp.asarray(params["w1"], jnp.float32)
    b1 = jnp.asarray(params["b1"], jnp.float32)
    w2 = jnp.asarray(params["w2"], jnp.float32)
    b2 = jnp.asarray(params["b2"], jnp.float32)
    w3 = jnp.asarray(params["w3"], jnp.float32)
    b3 = jnp.asarray(params["b3"], jnp.float32)

    H1, H2, OUT = w1.shape[0], w2.shape[0], w3.shape[0]
    assert w1.shape == (H1, D) and w2.shape == (H2, H1) and w3.shape == (OUT, H2)

    # Pad the 7-row output layer to 8 sublanes -> full (8,128)-aligned output stores.
    OUT_P = 8 * pl.cdiv(OUT, 8)
    w3p = jnp.pad(w3, ((0, OUT_P - OUT), (0, 0)))
    b1c = b1.reshape(H1, 1)
    b2c = b2.reshape(H2, 1)
    b3c = jnp.pad(b3.reshape(OUT, 1), ((0, OUT_P - OUT), (0, 0)))

    # ---- batch tile size ----------------------------------------------------------
    # Derived from a VMEM budget (double-buffered x tile + output tile) so large
    # batches amortize per-step overhead; keep >=2 grid steps for batches >=256 so the
    # "parallel" axis shards across v7x's two TensorCores.
    per_row_bytes = 2 * (D + OUT_P) * 4
    tm = max(128, (tile_vmem_budget_bytes // per_row_bytes) // 128 * 128)
    if tile_m is not None:                       # user override acts as an upper bound
        tm = min(tm, max(128, 128 * pl.cdiv(int(tile_m), 128)))
    if N >= 256:
        tm = min(tm, 128 * pl.cdiv(pl.cdiv(N, 128), 2))
    if tm >= N:
        tm = N                                   # single full-extent block (exact)
    grid = (pl.cdiv(N, tm),)

    param_bytes = 4 * int(w1.size + b1c.size + w2.size + b2c.size + w3p.size + b3c.size)
    vmem_need = 2 * 4 * tm * (D + OUT_P) + 2 * param_bytes
    vmem_limit = int(min(48 << 20, max(32 << 20, int(1.5 * vmem_need) + (4 << 20))))

    cost = pl.CostEstimate(
        flops=2 * N * (H1 * D + H2 * H1 + OUT_P * H2),
        transcendentals=N * OUT_P,                       # sigmoid exp
        bytes_accessed=4 * N * (D + OUT_P) + param_bytes,
    )

    const = lambda shape: pl.BlockSpec(shape, lambda i: (0, 0))  # VMEM-resident consts

    outT = pl.pallas_call(
        _mlp_kernel,
        out_shape=jax.ShapeDtypeStruct((OUT_P, N), jnp.float32),
        grid=grid,
        in_specs=[
            pl.BlockSpec((tm, D), lambda i: (i, 0)),     # contiguous x row tile
            const((H1, D)), const((H1, 1)),
            const((H2, H1)), const((H2, 1)),
            const((OUT_P, H2)), const((OUT_P, 1)),
        ],
        out_specs=pl.BlockSpec((OUT_P, tm), lambda i: (0, i)),   # batch on lanes
        compiler_params=pltpu.CompilerParams(
            dimension_semantics=("parallel",),
            vmem_limit_bytes=vmem_limit,
        ),
        cost_estimate=cost,
    )(x, w1, b1c, w2, b2c, w3p, b3c)

    # Lane-dense [OUT_P, N] -> [N, 7]; tiny (7*N floats) wrapper-side transpose.
    return outT[:OUT].T


def ager_regression_forward(ents_emb, ents, users_sensitive, params,
                            return_loss=False, **net_kwargs):
    """Mirrors AgerRegression.forward(ents_emb, ents, return_loss)."""
    output = ager_regression_net(ents_emb, params, **net_kwargs)
    output = jnp.squeeze(output)                            # matches torch .squeeze()
    a_labels = users_sensitive[ents].astype(jnp.float32)    # users_sensitive[ents]
    if return_loss:                                         # nn.MSELoss()
        return jnp.mean((output - a_labels) ** 2)
    return output, a_labels


def init_params(key, embed_dim):
    """Deterministic parameter init in PyTorch nn.Linear layout ([out, in], bias [out])."""
    d = int(embed_dim)
    h1, h2, out = d // 2, d // 4, 7
    ks = jax.random.split(key, 6)

    def lin(kw, kb, fan_in, fan_out):
        bound = 1.0 / jnp.sqrt(float(fan_in))
        w = jax.random.uniform(kw, (fan_out, fan_in), jnp.float32, -bound, bound)
        b = jax.random.uniform(kb, (fan_out,), jnp.float32, -bound, bound)
        return w, b

    w1, b1 = lin(ks[0], ks[1], d, h1)
    w2, b2 = lin(ks[2], ks[3], h1, h2)
    w3, b3 = lin(ks[4], ks[5], h2, out)
    return {"w1": w1, "b1": b1, "w2": w2, "b2": b2, "w3": w3, "b3": b3}


def _ref_net(x, p):
    """Plain-JAX f32 reference of the same MLP."""
    h1 = x @ p["w1"].T + p["b1"]
    h1 = jnp.where(h1 > 0, h1, 0.1 * h1)
    h2 = h1 @ p["w2"].T + p["b2"]
    h2 = jnp.where(h2 > 0, h2, 0.1 * h2)
    return jax.nn.sigmoid(h2 @ p["w3"].T + p["b3"])


if __name__ == "__main__":
    key = jax.random.PRNGKey(0)
    k_emb, k_par, k_sens, k_ents, k_emb2, k_ents2 = jax.random.split(key, 6)

    embed_dim = 32          # -> hidden 16 -> hidden 8 -> out 7
    batch = 8
    num_users = 64

    params = init_params(k_par, embed_dim)
    ents_emb = jax.random.normal(k_emb, (batch, embed_dim), dtype=jnp.float32)
    # users_sensitive: per-user 7-dim target labels (float), indexed by entity id
    users_sensitive = jax.random.uniform(k_sens, (num_users, 7), dtype=jnp.float32)
    ents = jax.random.randint(k_ents, (batch,), 0, num_users)

    output, a_labels = ager_regression_forward(ents_emb, ents, users_sensitive, params)
    output = jax.block_until_ready(output)
    a_labels = jax.block_until_ready(a_labels)
    assert output.shape == (batch, 7)
    assert a_labels.shape == (batch, 7)
    ref = jnp.squeeze(_ref_net(ents_emb, params))
    assert jnp.max(jnp.abs(output - ref)) < 1e-2

    # Ragged batch, forced small tile -> multi-step "parallel" grid with a partial
    # (masked) last block: exercises the no-pad edge handling.
    batch2 = 300
    ents_emb2 = jax.random.normal(k_emb2, (batch2, embed_dim), dtype=jnp.float32)
    ents2 = jax.random.randint(k_ents2, (batch2,), 0, num_users)
    out2, lbl2 = ager_regression_forward(ents_emb2, ents2, users_sensitive, params,
                                         tile_m=128)          # grid = 3
    out2 = jax.block_until_ready(out2)
    assert out2.shape == (batch2, 7) and lbl2.shape == (batch2, 7)
    ref2 = jnp.squeeze(_ref_net(ents_emb2, params))
    assert jnp.max(jnp.abs(out2 - ref2)) < 1e-2

    # Default (VMEM-budget-derived) tiling: grid = 2 so both v7x TensorCores are used.
    out3, _ = ager_regression_forward(ents_emb2, ents2, users_sensitive, params)
    out3 = jax.block_until_ready(out3)
    assert jnp.max(jnp.abs(out3 - ref2)) < 1e-2

    # Loss path (return_loss=True) — plain-JAX MSE on top of the kernel output.
    loss = jax.block_until_ready(
        ager_regression_forward(ents_emb, ents, users_sensitive, params,
                                return_loss=True))
    assert loss.shape == ()

    print("KERNEL_OK")
</pallas_src>

<mosaic_0001>
module attributes {stable_mosaic.version = 11 : i64} {
  func.func @_mlp_kernel(%arg0: i32, %arg1: memref<8x32xf32, #tpu.memory_space<vmem>>, %arg2: memref<16x32xf32, #tpu.memory_space<vmem>>, %arg3: memref<16x1xf32, #tpu.memory_space<vmem>>, %arg4: memref<8x16xf32, #tpu.memory_space<vmem>>, %arg5: memref<8x1xf32, #tpu.memory_space<vmem>>, %arg6: memref<8x8xf32, #tpu.memory_space<vmem>>, %arg7: memref<8x1xf32, #tpu.memory_space<vmem>>, %arg8: memref<8x8xf32, #tpu.memory_space<vmem>>) attributes {dimension_semantics = [#tpu.dimension_semantics<parallel>], iteration_bounds = array<i64: 1>, scalar_prefetch = 0 : i64, scratch_operands = 0 : i64, tpu.core_type = #tpu.core_type<tc>, window_params = [{transform_indices = @transform_0, window_bounds = array<i64: 8, 32>}, {pipeline_mode = #tpu.pipeline_mode<synchronous>, transform_indices = @transform_1, window_bounds = array<i64: 16, 32>}, {pipeline_mode = #tpu.pipeline_mode<synchronous>, transform_indices = @transform_2, window_bounds = array<i64: 16, 1>}, {pipeline_mode = #tpu.pipeline_mode<synchronous>, transform_indices = @transform_3, window_bounds = array<i64: 8, 16>}, {pipeline_mode = #tpu.pipeline_mode<synchronous>, transform_indices = @transform_4, window_bounds = array<i64: 8, 1>}, {pipeline_mode = #tpu.pipeline_mode<synchronous>, transform_indices = @transform_5, window_bounds = array<i64: 8, 8>}, {pipeline_mode = #tpu.pipeline_mode<synchronous>, transform_indices = @transform_6, window_bounds = array<i64: 8, 1>}, {transform_indices = @transform_7, window_bounds = array<i64: 8, 8>}]} {
    %c0 = arith.constant 0 : index
    %c0_0 = arith.constant 0 : index
    %0 = vector.load %arg1[%c0, %c0_0] : memref<8x32xf32, #tpu.memory_space<vmem>>, vector<8x32xf32>
    %c0_1 = arith.constant 0 : index
    %c0_2 = arith.constant 0 : index
    %1 = vector.load %arg2[%c0_1, %c0_2] : memref<16x32xf32, #tpu.memory_space<vmem>>, vector<16x32xf32>
    %cst = arith.constant dense<0.000000e+00> : vector<16x8xf32>
    %2 = tpu.matmul %1, %0, %cst {dimension_numbers = #tpu.dot_dimension_numbers<[1], [1], [0], [0], [0, 0, 1, 0], [], []>} : vector<16x32xf32>, vector<8x32xf32>, vector<16x8xf32> -> vector<16x8xf32>
    %c0_3 = arith.constant 0 : index
    %c0_4 = arith.constant 0 : index
    %3 = vector.load %arg3[%c0_3, %c0_4] : memref<16x1xf32, #tpu.memory_space<vmem>>, vector<16x1xf32>
    %4 = vector.broadcast %3 : vector<16x1xf32> to vector<16x8xf32>
    %5 = arith.addf %2, %4 : vector<16x8xf32>
    %cst_5 = arith.constant 1.000000e-01 : f32
    %6 = vector.broadcast %cst_5 : f32 to vector<16x8xf32>
    %7 = arith.mulf %6, %5 : vector<16x8xf32>
    %8 = arith.maximumf %5, %7 : vector<16x8xf32>
    %c0_6 = arith.constant 0 : index
    %c0_7 = arith.constant 0 : index
    %9 = vector.load %arg4[%c0_6, %c0_7] : memref<8x16xf32, #tpu.memory_space<vmem>>, vector<8x16xf32>
    %cst_8 = arith.constant dense<0.000000e+00> : vector<8x8xf32>
    %10 = tpu.matmul %9, %8, %cst_8 {dimension_numbers = #tpu.dot_dimension_numbers<[1], [0], [0], [1], [0, 0, 1, 1], [], []>} : vector<8x16xf32>, vector<16x8xf32>, vector<8x8xf32> -> vector<8x8xf32>
    %c0_9 = arith.constant 0 : index
    %c0_10 = arith.constant 0 : index
    %11 = vector.load %arg5[%c0_9, %c0_10] : memref<8x1xf32, #tpu.memory_space<vmem>>, vector<8x1xf32>
    %12 = vector.broadcast %11 : vector<8x1xf32> to vector<8x8xf32>
    %13 = arith.addf %10, %12 : vector<8x8xf32>
    %cst_11 = arith.constant 1.000000e-01 : f32
    %14 = vector.broadcast %cst_11 : f32 to vector<8x8xf32>
    %15 = arith.mulf %14, %13 : vector<8x8xf32>
    %16 = arith.maximumf %13, %15 : vector<8x8xf32>
    %c0_12 = arith.constant 0 : index
    %c0_13 = arith.constant 0 : index
    %17 = vector.load %arg6[%c0_12, %c0_13] : memref<8x8xf32, #tpu.memory_space<vmem>>, vector<8x8xf32>
    %cst_14 = arith.constant dense<0.000000e+00> : vector<8x8xf32>
    %18 = tpu.matmul %17, %16, %cst_14 {dimension_numbers = #tpu.dot_dimension_numbers<[1], [0], [0], [1], [0, 0, 1, 1], [], []>} : vector<8x8xf32>, vector<8x8xf32>, vector<8x8xf32> -> vector<8x8xf32>
    %c0_15 = arith.constant 0 : index
    %c0_16 = arith.constant 0 : index
    %19 = vector.load %arg7[%c0_15, %c0_16] : memref<8x1xf32, #tpu.memory_space<vmem>>, vector<8x1xf32>
    %20 = vector.broadcast %19 : vector<8x1xf32> to vector<8x8xf32>
    %21 = arith.addf %18, %20 : vector<8x8xf32>
    %22 = arith.negf %21 : vector<8x8xf32>
    %23 = math.exp %22 : vector<8x8xf32>
    %cst_17 = arith.constant 1.000000e+00 : f32
    %24 = vector.broadcast %cst_17 : f32 to vector<8x8xf32>
    %25 = arith.addf %24, %23 : vector<8x8xf32>
    %26 = arith.divf %24, %25 : vector<8x8xf32>
    %c0_18 = arith.constant 0 : index
    %c0_19 = arith.constant 0 : index
    %27 = vector.load %arg8[%c0_18, %c0_19] : memref<8x8xf32, #tpu.memory_space<vmem>>, vector<8x8xf32>
    tpu.vector_store %arg8[%c0_18, %c0_19], %26 {strides = array<i32>} : memref<8x8xf32, #tpu.memory_space<vmem>>, vector<8x8xf32>,
    return
  }
  func.func @transform_0(%arg0: i32) -> (i32, i32) {
    %c0_i32 = arith.constant 0 : i32
    %c0_i32_0 = arith.constant 0 : i32
    return %arg0, %c0_i32 : i32, i32
  }
  func.func @transform_1(%arg0: i32) -> (i32, i32) {
    %c0_i32 = arith.constant 0 : i32
    %c0_i32_0 = arith.constant 0 : i32
    %c0_i32_1 = arith.constant 0 : i32
    return %c0_i32, %c0_i32_0 : i32, i32
  }
  func.func @transform_2(%arg0: i32) -> (i32, i32) {
    %c0_i32 = arith.constant 0 : i32
    %c0_i32_0 = arith.constant 0 : i32
    %c0_i32_1 = arith.constant 0 : i32
    return %c0_i32, %c0_i32_0 : i32, i32
  }
  func.func @transform_3(%arg0: i32) -> (i32, i32) {
    %c0_i32 = arith.constant 0 : i32
    %c0_i32_0 = arith.constant 0 : i32
    %c0_i32_1 = arith.constant 0 : i32
    return %c0_i32, %c0_i32_0 : i32, i32
  }
  func.func @transform_4(%arg0: i32) -> (i32, i32) {
    %c0_i32 = arith.constant 0 : i32
    %c0_i32_0 = arith.constant 0 : i32
    %c0_i32_1 = arith.constant 0 : i32
    return %c0_i32, %c0_i32_0 : i32, i32
  }
  func.func @transform_5(%arg0: i32) -> (i32, i32) {
    %c0_i32 = arith.constant 0 : i32
    %c0_i32_0 = arith.constant 0 : i32
    %c0_i32_1 = arith.constant 0 : i32
    return %c0_i32, %c0_i32_0 : i32, i32
  }
  func.func @transform_6(%arg0: i32) -> (i32, i32) {
    %c0_i32 = arith.constant 0 : i32
    %c0_i32_0 = arith.constant 0 : i32
    %c0_i32_1 = arith.constant 0 : i32
    return %c0_i32, %c0_i32_0 : i32, i32
  }
  func.func @transform_7(%arg0: i32) -> (i32, i32) {
    %c0_i32 = arith.constant 0 : i32
    %c0_i32_0 = arith.constant 0 : i32
    return %c0_i32, %arg0 : i32, i32
  }
}

</mosaic_0001>

<llo_original>
// kernel: tpu_custom_call.1
$region0: #{tpu_custom_call.1}
  #allocation0 [shape = 'u32[]', space=smem, size = 0x4, offset = 0x4, fixed_abs, tag = 'smem constant byte address 0x4 - core index']
  #allocation1 [shape = 'u32[144,128]{1,0:T(1,128)}', space=vmem, size = 0x12000, scoped, tag = 'internal scratch']
  %s0 = inlined_call_operand.vmem [shape: f32[8,32], index: 0, kind: input, shape index: {}]
  %s1 = inlined_call_operand.vmem [shape: f32[16,32], index: 1, kind: input, shape index: {}]
  %s2 = inlined_call_operand.vmem [shape: f32[16,1], index: 2, kind: input, shape index: {}]
  %s3 = inlined_call_operand.vmem [shape: f32[8,16], index: 3, kind: input, shape index: {}]
  %s4 = inlined_call_operand.vmem [shape: f32[8,1], index: 4, kind: input, shape index: {}]
  %s5 = inlined_call_operand.vmem [shape: f32[8,8], index: 5, kind: input, shape index: {}]
  %s6 = inlined_call_operand.vmem [shape: f32[8,1], index: 6, kind: input, shape index: {}]
  %s7 = inlined_call_operand.hbm [shape: f32[8,8], index: 7, kind: output, shape index: {}]
  %s8 = sld [smem:[#allocation0]]
  $region38: #{tpu_custom_call.1} parent=0
    _
  %s10 = ssub.s32 1, %s8
  %s11 = scalar_select 0, %s10, %s8
  $region1: #{tpu_custom_call.1} parent=0
    #allocation2 [shape = 'u8[4096]{0}', space=vmem, size = 0x1000, scoped, tag = 'output window, operand 0, single buffered']
    #allocation3 [shape = 's32[1]{0}', space=sflag, size = 0x4, scoped, tag = 'scoped memory for tpu_custom_call.1']
    %12 = vsyncpa [#allocation3], 0
    // Predicated region
    $region2: #{tpu_custom_call.1} parent=1 // pred_check
      _
    $region3: #{tpu_custom_call.1} parent=1 // pred_check_branch
      %14 = sbr.rel (0) target = $region5
    $region4: #{tpu_custom_call.1} parent=1 // pred_region
      _
    $region5: #{tpu_custom_call.1} parent=1 // pred_fallthru
      _
    // Predicated region
    $region6: #{tpu_custom_call.1} parent=1 // pred_check
      _
    $region7: #{tpu_custom_call.1} parent=1 // pred_check_branch
      %16 = sbr.rel (0) target = $region9
    $region8: #{tpu_custom_call.1} parent=1 // pred_region
      _
    $region9: #{tpu_custom_call.1} parent=1 // pred_fallthru
      _
    // Predicated region
    $region10: #{tpu_custom_call.1} parent=1 // pred_check
      _
    $region11: #{tpu_custom_call.1} parent=1 // pred_check_branch
      %18 = sbr.rel (0) target = $region13
    $region12: #{tpu_custom_call.1} parent=1 // pred_region
      _
    $region13: #{tpu_custom_call.1} parent=1 // pred_fallthru
      _
    // Predicated region
    $region14: #{tpu_custom_call.1} parent=1 // pred_check
      _
    $region15: #{tpu_custom_call.1} parent=1 // pred_check_branch
      %20 = sbr.rel (0) target = $region17
    $region16: #{tpu_custom_call.1} parent=1 // pred_region
      _
    $region17: #{tpu_custom_call.1} parent=1 // pred_fallthru
      _
    // Predicated region
    $region18: #{tpu_custom_call.1} parent=1 // pred_check
      _
    $region19: #{tpu_custom_call.1} parent=1 // pred_check_branch
      %22 = sbr.rel (0) target = $region21
    $region20: #{tpu_custom_call.1} parent=1 // pred_region
      _
    $region21: #{tpu_custom_call.1} parent=1 // pred_fallthru
      _
    // Predicated region
    $region22: #{tpu_custom_call.1} parent=1 // pred_check
      _
    $region23: #{tpu_custom_call.1} parent=1 // pred_check_branch
      %24 = sbr.rel (0) target = $region25
    $region24: #{tpu_custom_call.1} parent=1 // pred_region
      _
    $region25: #{tpu_custom_call.1} parent=1 // pred_fallthru
      _
    // Predicated region
    $region26: #{tpu_custom_call.1} parent=1 // pred_check
      _
    $region27: #{tpu_custom_call.1} parent=1 // pred_check_branch
      %26 = sbr.rel (0) target = $region29
    $region28: #{tpu_custom_call.1} parent=1 // pred_region
      _
    $region29: #{tpu_custom_call.1} parent=1 // pred_fallthru
      _
    %v27 = vld [vmem:[%s0] sm:$0xff]
    %v28 = vld [vmem:[%s1] sm:$0xff]
    %v29 = vld [vmem:[%s1 + $0x8] sm:$0xff]
    %v30 = vld [vmem:[%s2] sm:$0xff]
    %v31 = vld [vmem:[%s2 + $0x8] sm:$0xff]
    %33 = vset.pattern.permute.xlu0 0
    %34 = vperm.xlu0 %33, %v30
    %v35 = vpop.permute.xlu0 %34
    %38 = vset.pattern.permute.xlu0 0
    %39 = vperm.xlu0 %38, %v31
    %v40 = vpop.permute.xlu0 %39
    %vm42 = vcmask 261120
    %v44 = vsel %vm42, %v28, 0
    %v47 = vsel %vm42, %v29, 0
    %v50 = vsel %vm42, %v27, 0
    %52 = vmatprep.subr.mxu0 0.0
    %53 = vmatpush1.xpose.msra.mxu0 0.0
    %54 = vmatprep.subr.mxu0 0.0
    %55 = vmatpush1.xpose.msra.mxu0 0.0
    %56 = vmatprep.subr.mxu0 0.0
    %57 = vmatpush1.xpose.msra.mxu0 0.0
    %58 = vmatprep.subr.mxu0 0.0
    %59 = vmatpush1.xpose.msra.mxu0 0.0
    %60 = vmatprep.subr.mxu0 0.0
    %61 = vmatpush1.xpose.msra.mxu0 0.0
    %62 = vmatprep.subr.mxu0 0.0
    %63 = vmatpush1.xpose.msra.mxu0 0.0
    %64 = vmatprep.subr.mxu0 0.0
    %65 = vmatpush1.xpose.msra.mxu0 0.0
    %66 = vmatprep.subr.mxu0 0.0
    %67 = vmatpush1.xpose.msra.mxu0 0.0
    %68 = vmatprep.subr.mxu0 0.0
    %69 = vmatpush1.xpose.msra.mxu0 0.0
    %70 = vmatprep.subr.mxu0 0.0
    %71 = vmatpush1.xpose.msra.mxu0 0.0
    %72 = vmatprep.subr.mxu0 0.0
    %73 = vmatpush1.xpose.msra.mxu0 0.0
    %74 = vmatprep.subr.mxu0 0.0
    %75 = vmatpush1.xpose.msra.mxu0 0.0
    %76 = vmatprep.subr.mxu0 0.0
    %77 = vmatpush1.xpose.msra.mxu0 0.0
    %78 = vmatprep.subr.mxu0 0.0
    %79 = vmatpush1.xpose.msra.mxu0 0.0
    %80 = vmatprep.subr.mxu0 0.0
    %81 = vmatpush1.xpose.msra.mxu0 0.0
    %82 = vmatprep.subr.mxu0 0.0
    %83 = vmatpush1.xpose.msra.mxu0 %v50
    %84 = vmatprep.subr.mxu0 0.0
    %85 = vmatpush2.xpose.msra.mxu0 0.0
    %86 = vmatprep.subr.mxu0 0.0
    %87 = vmatpush2.xpose.msra.mxu0 0.0
    %88 = vmatprep.subr.mxu0 0.0
    %89 = vmatpush2.xpose.msra.mxu0 0.0
    %90 = vmatprep.subr.mxu0 0.0
    %91 = vmatpush2.xpose.msra.mxu0 0.0
    %92 = vmatprep.subr.mxu0 0.0
    %93 = vmatpush2.xpose.msra.mxu0 0.0
    %94 = vmatprep.subr.mxu0 0.0
    %95 = vmatpush2.xpose.msra.mxu0 0.0
    %96 = vmatprep.subr.mxu0 0.0
    %97 = vmatpush2.xpose.msra.mxu0 0.0
    %98 = vmatprep.subr.mxu0 0.0
    %99 = vmatpush2.xpose.msra.mxu0 0.0
    %100 = vmatprep.subr.mxu0 0.0
    %101 = vmatpush2.xpose.msra.mxu0 0.0
    %102 = vmatprep.subr.mxu0 0.0
    %103 = vmatpush2.xpose.msra.mxu0 0.0
    %104 = vmatprep.subr.mxu0 0.0
    %105 = vmatpush2.xpose.msra.mxu0 0.0
    %106 = vmatprep.subr.mxu0 0.0
    %107 = vmatpush2.xpose.msra.mxu0 0.0
    %108 = vmatprep.subr.mxu0 0.0
    %109 = vmatpush2.xpose.msra.mxu0 0.0
    %110 = vmatprep.subr.mxu0 0.0
    %111 = vmatpush2.xpose.msra.mxu0 0.0
    %112 = vmatprep.subr.mxu0 0.0
    %113 = vmatpush2.xpose.msra.mxu0 0.0
    %114 = vmatprep.subr.mxu0 0.0
    %115 = vmatpush2.xpose.msra.mxu0 0.0
    %116 = vmatprep.mubr.f32.mxu0 0.0
    %117 = vmatmul.mubr.f32.gmra.mxu0 %v44
    %v118 = vpop.f32.mrf.mxu0
    %v119 = vadd.f32 %v35, %v118
    %v120 = vpop.f32.mrf.mxu0
    %121 = vmatprep.mubr.f32.mxu0 0.0
    %122 = vmatmul.mubr.f32.gmra.mxu0 %v47
    %v123 = vpop.f32.mrf.mxu0
    %v124 = vadd.f32 %v40, %v123
    %v125 = vpop.f32.mrf.mxu0
    %126 = vdwg.mxu0
    %v127 = vmul.f32 %v119, 0.1
    %v128 = vmul.f32 %v124, 0.1
    %v129 = vmax.f32 %v119, %v127
    %v130 = vmax.f32 %v124, %v128
    %v131 = vld [vmem:[%s3] sm:$0xff]
    %v132 = vld [vmem:[%s4] sm:$0xff]
    %134 = vset.pattern.permute.xlu0 0
    %135 = vperm.xlu0 %134, %v132
    %v136 = vpop.permute.xlu0 %135
    %vm138 = vcmask 130048
    %v140 = vsel %vm138, %v131, 0
    %142 = vmatprep.subr.mxu0 0.0
    %143 = vmatpush1.msra.mxu0 0.0
    %144 = vmatprep.subr.mxu0 0.0
    %145 = vmatpush1.msra.mxu0 0.0
    %146 = vmatprep.subr.mxu0 0.0
    %147 = vmatpush1.msra.mxu0 0.0
    %148 = vmatprep.subr.mxu0 0.0
    %149 = vmatpush1.msra.mxu0 0.0
    %150 = vmatprep.subr.mxu0 0.0
    %151 = vmatpush1.msra.mxu0 0.0
    %152 = vmatprep.subr.mxu0 0.0
    %153 = vmatpush1.msra.mxu0 0.0
    %154 = vmatprep.subr.mxu0 0.0
    %155 = vmatpush1.msra.mxu0 0.0
    %156 = vmatprep.subr.mxu0 0.0
    %157 = vmatpush1.msra.mxu0 0.0
    %158 = vmatprep.subr.mxu0 0.0
    %159 = vmatpush1.msra.mxu0 0.0
    %160 = vmatprep.subr.mxu0 0.0
    %161 = vmatpush1.msra.mxu0 0.0
    %162 = vmatprep.subr.mxu0 0.0
    %163 = vmatpush1.msra.mxu0 0.0
    %164 = vmatprep.subr.mxu0 0.0
    %165 = vmatpush1.msra.mxu0 0.0
    %166 = vmatprep.subr.mxu0 0.0
    %167 = vmatpush1.msra.mxu0 0.0
    %168 = vmatprep.subr.mxu0 0.0
    %169 = vmatpush1.msra.mxu0 0.0
    %170 = vmatprep.subr.mxu0 0.0
    %171 = vmatpush1.msra.mxu0 %v130
    %172 = vmatprep.subr.mxu0 0.0
    %173 = vmatpush1.msra.mxu0 %v129
    %174 = vmatprep.subr.mxu0 0.0
    %175 = vmatpush2.msra.mxu0 0.0
    %176 = vmatprep.subr.mxu0 0.0
    %177 = vmatpush2.msra.mxu0 0.0
    %178 = vmatprep.subr.mxu0 0.0
    %179 = vmatpush2.msra.mxu0 0.0
    %180 = vmatprep.subr.mxu0 0.0
    %181 = vmatpush2.msra.mxu0 0.0
    %182 = vmatprep.subr.mxu0 0.0
    %183 = vmatpush2.msra.mxu0 0.0
    %184 = vmatprep.subr.mxu0 0.0
    %185 = vmatpush2.msra.mxu0 0.0
    %186 = vmatprep.subr.mxu0 0.0
    %187 = vmatpush2.msra.mxu0 0.0
    %188 = vmatprep.subr.mxu0 0.0
    %189 = vmatpush2.msra.mxu0 0.0
    %190 = vmatprep.subr.mxu0 0.0
    %191 = vmatpush2.msra.mxu0 0.0
    %192 = vmatprep.subr.mxu0 0.0
    %193 = vmatpush2.msra.mxu0 0.0
    %194 = vmatprep.subr.mxu0 0.0
    %195 = vmatpush2.msra.mxu0 0.0
    %196 = vmatprep.subr.mxu0 0.0
    %197 = vmatpush2.msra.mxu0 0.0
    %198 = vmatprep.subr.mxu0 0.0
    %199 = vmatpush2.msra.mxu0 0.0
    %200 = vmatprep.subr.mxu0 0.0
    %201 = vmatpush2.msra.mxu0 0.0
    %202 = vmatprep.subr.mxu0 0.0
    %203 = vmatpush2.msra.mxu0 0.0
    %204 = vmatprep.subr.mxu0 0.0
    %205 = vmatpush2.msra.mxu0 0.0
    %206 = vmatprep.mubr.f32.mxu0 0.0
    %207 = vmatmul.mubr.f32.gmra.mxu0 %v140
    %v208 = vpop.f32.mrf.mxu0
    %v209 = vadd.f32 %v136, %v208
    %v210 = vpop.f32.mrf.mxu0
    %211 = vdwg.mxu0
    %v212 = vmul.f32 %v209, 0.1
    %v213 = vmax.f32 %v209, %v212
    %v214 = vld [vmem:[%s5] sm:$0xff]
    %v215 = vld [vmem:[%s6] sm:$0xff]
    %217 = vset.pattern.permute.xlu0 0
    %218 = vperm.xlu0 %217, %v215
    %v219 = vpop.permute.xlu0 %218
    %vm221 = vcmask 64512
    %v223 = vsel %vm221, %v214, 0
    %225 = vmatprep.subr.mxu0 0.0
    %226 = vmatpush1.msra.mxu0 0.0
    %227 = vmatprep.subr.mxu0 0.0
    %228 = vmatpush1.msra.mxu0 0.0
    %229 = vmatprep.subr.mxu0 0.0
    %230 = vmatpush1.msra.mxu0 0.0
    %231 = vmatprep.subr.mxu0 0.0
    %232 = vmatpush1.msra.mxu0 0.0
    %233 = vmatprep.subr.mxu0 0.0
    %234 = vmatpush1.msra.mxu0 0.0
    %235 = vmatprep.subr.mxu0 0.0
    %236 = vmatpush1.msra.mxu0 0.0
    %237 = vmatprep.subr.mxu0 0.0
    %238 = vmatpush1.msra.mxu0 0.0
    %239 = vmatprep.subr.mxu0 0.0
    %240 = vmatpush1.msra.mxu0 0.0
    %241 = vmatprep.subr.mxu0 0.0
    %242 = vmatpush1.msra.mxu0 0.0
    %243 = vmatprep.subr.mxu0 0.0
    %244 = vmatpush1.msra.mxu0 0.0
    %245 = vmatprep.subr.mxu0 0.0
    %246 = vmatpush1.msra.mxu0 0.0
    %247 = vmatprep.subr.mxu0 0.0
    %248 = vmatpush1.msra.mxu0 0.0
    %249 = vmatprep.subr.mxu0 0.0
    %250 = vmatpush1.msra.mxu0 0.0
    %251 = vmatprep.subr.mxu0 0.0
    %252 = vmatpush1.msra.mxu0 0.0
    %253 = vmatprep.subr.mxu0 0.0
    %254 = vmatpush1.msra.mxu0 0.0
    %255 = vmatprep.subr.mxu0 0.0
    %256 = vmatpush1.msra.mxu0 %v213
    %257 = vmatprep.subr.mxu0 0.0
    %258 = vmatpush2.msra.mxu0 0.0
    %259 = vmatprep.subr.mxu0 0.0
    %260 = vmatpush2.msra.mxu0 0.0
    %261 = vmatprep.subr.mxu0 0.0
    %262 = vmatpush2.msra.mxu0 0.0
    %263 = vmatprep.subr.mxu0 0.0
    %264 = vmatpush2.msra.mxu0 0.0
    %265 = vmatprep.subr.mxu0 0.0
    %266 = vmatpush2.msra.mxu0 0.0
    %267 = vmatprep.subr.mxu0 0.0
    %268 = vmatpush2.msra.mxu0 0.0
    %269 = vmatprep.subr.mxu0 0.0
    %270 = vmatpush2.msra.mxu0 0.0
    %271 = vmatprep.subr.mxu0 0.0
    %272 = vmatpush2.msra.mxu0 0.0
    %273 = vmatprep.subr.mxu0 0.0
    %274 = vmatpush2.msra.mxu0 0.0
    %275 = vmatprep.subr.mxu0 0.0
    %276 = vmatpush2.msra.mxu0 0.0
    %277 = vmatprep.subr.mxu0 0.0
    %278 = vmatpush2.msra.mxu0 0.0
    %279 = vmatprep.subr.mxu0 0.0
    %280 = vmatpush2.msra.mxu0 0.0
    %281 = vmatprep.subr.mxu0 0.0
    %282 = vmatpush2.msra.mxu0 0.0
    %283 = vmatprep.subr.mxu0 0.0
    %284 = vmatpush2.msra.mxu0 0.0
    %285 = vmatprep.subr.mxu0 0.0
    %286 = vmatpush2.msra.mxu0 0.0
    %287 = vmatprep.subr.mxu0 0.0
    %288 = vmatpush2.msra.mxu0 0.0
    %289 = vmatprep.mubr.f32.mxu0 0.0
    %290 = vmatmul.mubr.f32.gmra.mxu0 %v223
    %v291 = vpop.f32.mrf.mxu0
    %v292 = vadd.f32 %v219, %v291
    %v293 = vpop.f32.mrf.mxu0
    %294 = vdwg.mxu0
    %v295 = vxor.u32 %v292, 2147483648
    %v296 = vmul.f32 %v295, 1.442695
    %v297 = vpow.pop %v296
    %v298 = vadd.f32 %v297, 1.0
    %v299 = vrcp.pop %v298
    %v300 = vmul.f32 1.0, %v299
    %301 = vst.msk [vmem:[#allocation2] sm:$0xff] %vm221, %v300
    // Predicated region
    $region30: #{tpu_custom_call.1} parent=1 // pred_check
      _
    $region31: #{tpu_custom_call.1} parent=1 // pred_check_branch
      %303 = sbr.rel (0) target = $region33
    $region32: #{tpu_custom_call.1} parent=1 // pred_region
      %s305 = ssub.s32 128, 128
      %306 = vsyncadd [#allocation3], %s305
      %s308 = sshll.u32 [#allocation2], 4
      %s309 = int_to_ptr.vmem [resolvable:$true] %s308
      %311 = dma.vmem_to_hbm [thread:$0]  %s309, 128, %s7, [#allocation3]
    $region33: #{tpu_custom_call.1} parent=1 // pred_fallthru
      _
    // Predicated region
    $region34: #{tpu_custom_call.1} parent=1 // pred_check
      _
    $region35: #{tpu_custom_call.1} parent=1 // pred_check_branch
      %313 = sbr.rel (0) target = $region37
    $region36: #{tpu_custom_call.1} parent=1 // pred_region
      %314 = dma.done [#allocation3], 128
    $region37: #{tpu_custom_call.1} parent=1 // pred_fallthru
      _
    %315 = vsyncpa [#allocation3], 1

</llo_original>
